<compile_context>
chip_gen: v7x
topology: tpu7x:2x2x1
jax: 0.10.0
libtpu: 0.0.40
codegen_flags: <defaults>
</compile_context>

<pallas_src>
import functools

import jax
import jax.numpy as jnp
import numpy as np
from jax.experimental import pallas as pl
from jax.experimental.pallas import tpu as pltpu


def _sublane_multiple(dtype) -> int:
    # Packed-sublane tile height per dtype width (f32:8, bf16:16, int8/fp8:32).
    return {4: 8, 2: 16, 1: 32}.get(jnp.dtype(dtype).itemsize, 8)


def _round_up(a: int, b: int) -> int:
    return ((a + b - 1) // b) * b


def _stce_kernel(x_ref, t_ref, o_ref, acc_ref, *, bm, total_rows, steps_per_core):
    c = pl.program_id(0)   # core / partial-sum index ("parallel")
    i = pl.program_id(1)   # tile index within this core's share ("arbitrary")

    @pl.when(i == 0)
    def _():
        acc_ref[...] = jnp.zeros_like(acc_ref)

    x = x_ref[...].astype(jnp.float32)
    t = t_ref[...].astype(jnp.float32)

    # Numerically stable log-softmax along the class (lane) axis.
    m = jnp.max(x, axis=-1, keepdims=True)
    z = x - m
    lse = jnp.log(jnp.sum(jnp.exp(z), axis=-1, keepdims=True))
    log_sm = z - lse                                          # (bm, C)

    per_row = jnp.sum(-t * log_sm, axis=-1, keepdims=True)    # (bm, 1)

    # Mask rows of padded / duplicated trailing tiles that fall outside the
    # real batch (uses the *unclamped* logical tile index).
    row0 = (c * steps_per_core + i) * bm
    rows = row0 + jax.lax.broadcasted_iota(jnp.int32, (bm, 1), 0)
    per_row = jnp.where(rows < total_rows, per_row, 0.0)

    acc_ref[...] += per_row

    # Finalize this core's partial sum only once; keeps every other step's work
    # on the VPU/XLU where it overlaps the input DMA.
    @pl.when(i == pl.num_programs(1) - 1)
    def _():
        o_ref[...] = jnp.sum(acc_ref[...]).reshape(1, 1, 1)


def soft_target_cross_entropy(x: jax.Array, target: jax.Array, *, bm=None,
                              num_cores: int = 2) -> jax.Array:
    """loss = mean_b( sum_c( -target * log_softmax(x, -1) ) ) as a Pallas kernel."""
    assert x.shape == target.shape and x.ndim == 2
    B, C = x.shape
    in_bytes_per_elem = x.dtype.itemsize + target.dtype.itemsize
    sub = max(_sublane_multiple(x.dtype), _sublane_multiple(target.dtype))

    if bm is None:
        # ~40 MiB of double-buffered input tiles: safe on v7x's 64 MiB VMEM and
        # well past the >=512-row point where the streaming pipeline reaches
        # ~85% of the HBM roofline on v5e/v6e/v7x.
        tile_budget_bytes = 40 * 1024 * 1024
        bytes_per_row = 2 * C * in_bytes_per_elem              # 2 pipeline buffers
        bm = max(sub, (tile_budget_bytes // bytes_per_row) // sub * sub)
        # No point making a tile larger than one core's share of the batch.
        bm = min(bm, _round_up(pl.cdiv(B, num_cores), sub))
    bm = max(sub, (bm // sub) * sub)

    num_tiles = pl.cdiv(B, bm)
    nc = max(1, min(num_cores, num_tiles))
    spc = pl.cdiv(num_tiles, nc)                               # steps per core

    def in_map(c, i):
        # Clamp so a core's overhanging last step reads a valid tile; its rows
        # are masked inside the kernel so they contribute zero.
        return (jnp.minimum(c * spc + i, num_tiles - 1), 0)

    # Double-buffered input footprint + scratch; raise the scoped VMEM limit.
    footprint = 2 * bm * C * in_bytes_per_elem + 4 * bm
    vmem_limit = int(min(footprint + 16 * 1024 * 1024, 128 * 1024 * 1024))

    cost = pl.CostEstimate(
        flops=5 * B * C,
        transcendentals=B * C + B,            # exp per element + log per row
        bytes_accessed=B * C * in_bytes_per_elem + nc * 4,
    )

    kernel = functools.partial(_stce_kernel, bm=bm, total_rows=B, steps_per_core=spc)

    partials = pl.pallas_call(
        kernel,
        out_shape=jax.ShapeDtypeStruct((nc, 1, 1), jnp.float32),
        grid_spec=pltpu.PrefetchScalarGridSpec(
            num_scalar_prefetch=0,
            grid=(nc, spc),
            in_specs=[
                pl.BlockSpec((bm, C), in_map),
                pl.BlockSpec((bm, C), in_map),
            ],
            out_specs=pl.BlockSpec((1, 1, 1), lambda c, i: (c, 0, 0)),
            scratch_shapes=[pltpu.VMEM((bm, 1), jnp.float32)],
        ),
        compiler_params=pltpu.CompilerParams(
            dimension_semantics=("parallel", "arbitrary"),
            vmem_limit_bytes=vmem_limit,
        ),
        cost_estimate=cost,
    )(x, target)

    # Combine the per-core partial sums and take the mean over the real batch.
    return jnp.sum(partials) / jnp.float32(B)


def _reference(x, target):
    log_sm = jax.nn.log_softmax(x.astype(jnp.float32), axis=-1)
    return jnp.mean(jnp.sum(-target.astype(jnp.float32) * log_sm, axis=-1))


if __name__ == "__main__":
    key = jax.random.PRNGKey(0)
    kx, kt = jax.random.split(key)

    # Small shapes consistent with the module: batch=16, num_classes=32.
    B, C = 16, 32
    x = jax.random.normal(kx, (B, C), dtype=jnp.float32)
    t_logits = jax.random.normal(kt, (B, C), dtype=jnp.float32)
    target = jax.nn.softmax(t_logits, axis=-1)   # soft targets, rows sum to 1

    loss = jax.block_until_ready(soft_target_cross_entropy(x, target))
    ref = jax.block_until_ready(_reference(x, target))
    assert np.allclose(np.asarray(loss), np.asarray(ref), rtol=1e-5, atol=1e-5), (loss, ref)

    # Uneven batch (exercises the partial-tile mask + per-core partial sums).
    B2 = 13
    x2 = jax.random.normal(kx, (B2, C), dtype=jnp.float32)
    t2 = jax.nn.softmax(jax.random.normal(kt, (B2, C), dtype=jnp.float32), axis=-1)
    loss2 = jax.block_until_ready(soft_target_cross_entropy(x2, t2))
    ref2 = jax.block_until_ready(_reference(x2, t2))
    assert np.allclose(np.asarray(loss2), np.asarray(ref2), rtol=1e-5, atol=1e-5), (loss2, ref2)

    print("KERNEL_OK")
</pallas_src>

<mosaic_0001>
module attributes {stable_mosaic.version = 11 : i64} {
  func.func @_stce_kernel(%arg0: i32, %arg1: i32, %arg2: memref<8x32xf32, #tpu.memory_space<vmem>>, %arg3: memref<8x32xf32, #tpu.memory_space<vmem>>, %arg4: memref<1x1x1xf32, #tpu.memory_space<vmem>>, %arg5: memref<8x1xf32, #tpu.memory_space<vmem>>) attributes {dimension_semantics = [#tpu.dimension_semantics<parallel>, #tpu.dimension_semantics<arbitrary>], iteration_bounds = array<i64: 2, 1>, scalar_prefetch = 0 : i64, scratch_operands = 1 : i64, tpu.core_type = #tpu.core_type<tc>, window_params = [{transform_indices = @transform_0, window_bounds = array<i64: 8, 32>}, {transform_indices = @transform_1, window_bounds = array<i64: 8, 32>}, {transform_indices = @transform_2, window_bounds = array<i64: 1, 1, 1>}]} {
    %c0_i32 = arith.constant 0 : i32
    %0 = arith.cmpi eq, %arg1, %c0_i32 : i32
    %1 = arith.extui %0 : i1 to i32
    %c0_i32_0 = arith.constant 0 : i32
    %2 = arith.cmpi ne, %1, %c0_i32_0 : i32
    scf.if %2 {
      %cst_14 = arith.constant 0.000000e+00 : f32
      %36 = vector.broadcast %cst_14 : f32 to vector<8x1xf32>
      %c0_15 = arith.constant 0 : index
      %c0_16 = arith.constant 0 : index
      %37 = vector.load %arg5[%c0_15, %c0_16] : memref<8x1xf32, #tpu.memory_space<vmem>>, vector<8x1xf32>
      tpu.vector_store %arg5[%c0_15, %c0_16], %36 {strides = array<i32>} : memref<8x1xf32, #tpu.memory_space<vmem>>, vector<8x1xf32>,
    } else {
    }
    %c0 = arith.constant 0 : index
    %c0_1 = arith.constant 0 : index
    %3 = vector.load %arg2[%c0, %c0_1] : memref<8x32xf32, #tpu.memory_space<vmem>>, vector<8x32xf32>
    %c0_2 = arith.constant 0 : index
    %c0_3 = arith.constant 0 : index
    %4 = vector.load %arg3[%c0_2, %c0_3] : memref<8x32xf32, #tpu.memory_space<vmem>>, vector<8x32xf32>
    %cst = arith.constant dense<0xFF800000> : vector<8xf32>
    %5 = vector.multi_reduction <maximumf>, %3, %cst [1] : vector<8x32xf32> to vector<8xf32>
    %6 = vector.shape_cast %5 : vector<8xf32> to vector<8x1xf32>
    %7 = vector.broadcast %6 : vector<8x1xf32> to vector<8x32xf32>
    %8 = arith.subf %3, %7 : vector<8x32xf32>
    %9 = math.exp %8 : vector<8x32xf32>
    %cst_4 = arith.constant dense<0.000000e+00> : vector<8xf32>
    %10 = vector.multi_reduction <add>, %9, %cst_4 [1] : vector<8x32xf32> to vector<8xf32>
    %11 = vector.shape_cast %10 : vector<8xf32> to vector<8x1xf32>
    %12 = math.log %11 : vector<8x1xf32>
    %13 = vector.broadcast %12 : vector<8x1xf32> to vector<8x32xf32>
    %14 = arith.subf %8, %13 : vector<8x32xf32>
    %cst_5 = arith.constant 0.000000e+00 : f32
    %15 = vector.broadcast %cst_5 : f32 to vector<8x32xf32>
    %16 = arith.subf %15, %4 : vector<8x32xf32>
    %17 = arith.mulf %16, %14 : vector<8x32xf32>
    %cst_6 = arith.constant dense<0.000000e+00> : vector<8xf32>
    %18 = vector.multi_reduction <add>, %17, %cst_6 [1] : vector<8x32xf32> to vector<8xf32>
    %19 = vector.shape_cast %18 : vector<8xf32> to vector<8x1xf32>
    %c1_i32 = arith.constant 1 : i32
    %20 = arith.muli %arg0, %c1_i32 : i32
    %21 = arith.addi %20, %arg1 : i32
    %c8_i32 = arith.constant 8 : i32
    %22 = arith.muli %21, %c8_i32 : i32
    %23 = tpu.iota {dimensions = array<i32: 0>} : vector<8x1xi32>
    %24 = vector.broadcast %22 : i32 to vector<8x1xi32>
    %25 = arith.addi %24, %23 : vector<8x1xi32>
    %c16_i32 = arith.constant 16 : i32
    %26 = vector.broadcast %c16_i32 : i32 to vector<8x1xi32>
    %27 = arith.cmpi slt, %25, %26 : vector<8x1xi32>
    %cst_7 = arith.constant 0.000000e+00 : f32
    %28 = vector.broadcast %cst_7 : f32 to vector<8x1xf32>
    %29 = arith.select %27, %19, %28 : vector<8x1xi1>, vector<8x1xf32>
    %c0_8 = arith.constant 0 : index
    %c0_9 = arith.constant 0 : index
    %30 = vector.load %arg5[%c0_8, %c0_9] : memref<8x1xf32, #tpu.memory_space<vmem>>, vector<8x1xf32>
    %31 = arith.addf %30, %29 : vector<8x1xf32>
    %c0_10 = arith.constant 0 : index
    %c0_11 = arith.constant 0 : index
    %32 = vector.load %arg5[%c0_10, %c0_11] : memref<8x1xf32, #tpu.memory_space<vmem>>, vector<8x1xf32>
    tpu.vector_store %arg5[%c0_10, %c0_11], %31 {strides = array<i32>} : memref<8x1xf32, #tpu.memory_space<vmem>>, vector<8x1xf32>,
    %c0_i32_12 = arith.constant 0 : i32
    %33 = arith.cmpi eq, %arg1, %c0_i32_12 : i32
    %34 = arith.extui %33 : i1 to i32
    %c0_i32_13 = arith.constant 0 : i32
    %35 = arith.cmpi ne, %34, %c0_i32_13 : i32
    scf.if %35 {
      %c0_14 = arith.constant 0 : index
      %c0_15 = arith.constant 0 : index
      %36 = vector.load %arg5[%c0_14, %c0_15] : memref<8x1xf32, #tpu.memory_space<vmem>>, vector<8x1xf32>
      %37 = vector.shape_cast %36 : vector<8x1xf32> to vector<1x8x1xf32>
      %cst_16 = arith.constant dense<0.000000e+00> : vector<1xf32>
      %38 = vector.multi_reduction <add>, %37, %cst_16 [1, 2] : vector<1x8x1xf32> to vector<1xf32>
      %39 = vector.shape_cast %38 : vector<1xf32> to vector<1x1x1xf32>
      %40 = vector.extract %39[0, 0, 0] : f32 from vector<1x1x1xf32>
      %41 = vector.broadcast %40 : f32 to vector<1x1x1xf32>
      %c0_17 = arith.constant 0 : index
      %c0_18 = arith.constant 0 : index
      %c0_19 = arith.constant 0 : index
      %42 = vector.load %arg4[%c0_17, %c0_18, %c0_19] : memref<1x1x1xf32, #tpu.memory_space<vmem>>, vector<1x1x1xf32>
      tpu.vector_store %arg4[%c0_17, %c0_18, %c0_19], %41 {strides = array<i32>} : memref<1x1x1xf32, #tpu.memory_space<vmem>>, vector<1x1x1xf32>,
    } else {
    }
    return
  }
  func.func @transform_0(%arg0: i32, %arg1: i32) -> (i32, i32) {
    %c1_i32 = arith.constant 1 : i32
    %0 = arith.muli %arg0, %c1_i32 : i32
    %1 = arith.addi %0, %arg1 : i32
    %c1_i32_0 = arith.constant 1 : i32
    %2 = arith.minsi %1, %c1_i32_0 : i32
    %c0_i32 = arith.constant 0 : i32
    %c0_i32_1 = arith.constant 0 : i32
    return %2, %c0_i32 : i32, i32
  }
  func.func @transform_1(%arg0: i32, %arg1: i32) -> (i32, i32) {
    %c1_i32 = arith.constant 1 : i32
    %0 = arith.muli %arg0, %c1_i32 : i32
    %1 = arith.addi %0, %arg1 : i32
    %c1_i32_0 = arith.constant 1 : i32
    %2 = arith.minsi %1, %c1_i32_0 : i32
    %c0_i32 = arith.constant 0 : i32
    %c0_i32_1 = arith.constant 0 : i32
    return %2, %c0_i32 : i32, i32
  }
  func.func @transform_2(%arg0: i32, %arg1: i32) -> (i32, i32, i32) {
    %c0_i32 = arith.constant 0 : i32
    %c0_i32_0 = arith.constant 0 : i32
    %c0_i32_1 = arith.constant 0 : i32
    return %arg0, %c0_i32, %c0_i32_0 : i32, i32, i32
  }
}

</mosaic_0001>

<llo_original>
// kernel: tpu_custom_call.1
$region0: #{tpu_custom_call.1}
  #allocation0 [shape = 'u32[]', space=smem, size = 0x4, offset = 0x4, fixed_abs, tag = 'smem constant byte address 0x4 - core index']
  #allocation1 [shape = 'u32[144,128]{1,0:T(1,128)}', space=vmem, size = 0x12000, scoped, tag = 'internal scratch']
  #allocation2 [shape = 'f32[8,1]{1,0:T(8,128)}', space=vmem, size = 0x1000, scoped, tag = 'scratch operand']
  %s0 = inlined_call_operand.hbm [shape: f32[16,32], index: 0, kind: input, shape index: {}]
  %s1 = inlined_call_operand.hbm [shape: f32[16,32], index: 1, kind: input, shape index: {}]
  %s2 = inlined_call_operand.vmem [shape: f32[2,1,1], index: 2, kind: output, shape index: {}]
  %s3 = sld [smem:[#allocation0]]
  $region57: #{tpu_custom_call.1} parent=0
    _
  %s5 = ssub.s32 1, %s3
  %s6 = scalar_select 0, %s5, %s3
  $region1: #{tpu_custom_call.1} parent=0
    #allocation3 [shape = 'u8[8192]{0}', space=vmem, size = 0x2000, scoped, tag = 'input window, operand 0']
    #allocation4 [shape = 's32[2]{0}', space=sflag, size = 0x8, scoped, tag = 'scoped memory for tpu_custom_call.1']
    #allocation5 [shape = 'u8[8192]{0}', space=vmem, size = 0x2000, scoped, tag = 'input window, operand 1']
    #allocation6 [shape = 's32[2]{0}', space=sflag, size = 0x8, scoped, tag = 'scoped memory for tpu_custom_call.1']
    %7 = vsyncpa [#allocation4], 0
    %s8 = scalar_lea.sflag [#allocation4], 1
    %9 = vsyncpa %s8, 0
    %10 = vsyncpa [#allocation6], 0
    %s11 = scalar_lea.sflag [#allocation6], 1
    %12 = vsyncpa %s11, 0
    loop: start=0, step=1, limit=4
    $region2: #{tpu_custom_call.1} parent=1 // loop_pre_header
      _
    $region3: #{tpu_custom_call.1} parent=1 // loop_header
      %s14 = sphi 0, %s18
      %p15 = scmp.ge.s32.totalorder %s14, 4
      %s21 = sphi 0, %s33
      %s22 = sphi 0, %s29
      %s23 = sphi 0, %s21
      %s24 = sphi 0, %s22
      %s25 = sphi 0, %s23
      %s26 = sphi 0, %s24
      %s42 = sphi 0, %s44
      %s45 = sphi 0, %s42
      %s46 = sphi 0, %s45
      %s62 = sphi 0, %s46
      %s74 = sphi 0, %s76
      %s77 = sphi 0, %s74
      %s78 = sphi 0, %s77
      %s94 = sphi 0, %s78
      %s100 = sphi 0, %s102
      %s103 = sphi 0, %s100
      %s104 = sphi 0, %s103
      %s120 = sphi 0, %s104
    $region4: #{tpu_custom_call.1} parent=1 // loop_header_branch
      %17 = sbr.rel (%p15) target = $region8
    $region5: #{tpu_custom_call.1} parent=1 // loop_body
      %s19 = ssub.s32 %s14, 1
      %s20 = ssub.s32 %s14, 2
      %s27 = sadd.s32 1, %s22
      %p28 = scmp.ge.s32.totalorder %s27, 1
      %s29 = scalar_select %p28, 0, %s27
      %s30 = sadd.s32 1, %s21
      %s31 = scalar_select %p28, %s30, %s21
      %p32 = scmp.ge.s32.totalorder %s31, 2
      %s33 = scalar_select %p32, 0, %s31
      %s34 = sadd.s32 %s21, %s22
      %p35 = scmp.lt.s32.totalorder %s34, 1
      %s36 = scalar_select %p35, %s34, 1
      %s37 = sadd.s32 %s33, %s29
      %p38 = scmp.lt.s32.totalorder %s37, 1
      %s39 = scalar_select %p38, %s37, 1
      %s40 = ssub.s32 %s36, %s39
      %p41 = scmp.eq.s32.totalorder %s40, 0
      %s43 = sadd.s32 %s42, 1
      %s44 = scalar_select %p41, %s42, %s43
      %p47 = pneg %p41
      %p48 = scmp.eq.s32.totalorder %s14, 1
      %p49 = por %p47, %p48
      %p50 = scmp.ne.s32.totalorder %s42, %s45
      %p51 = scmp.eq.s32.totalorder %s14, 0
      %p52 = por %p50, %p51
      %p53 = scmp.ne.s32.totalorder %s42, %s45
      %p54 = scmp.eq.s32.totalorder %s19, 1
      %p55 = por %p53, %p54
      %p56 = scmp.ne.s32.totalorder %s45, %s46
      %p57 = scmp.eq.s32.totalorder %s19, 0
      %p58 = por %p56, %p57
      %p59 = scmp.ne.s32.totalorder %s45, %s46
      %p60 = scmp.eq.s32.totalorder %s20, 1
      %p61 = por %p59, %p60
      %p63 = scmp.ne.s32.totalorder %s46, %s62
      %p64 = scmp.eq.s32.totalorder %s20, 0
      %p65 = por %p63, %p64
      %s66 = sadd.s32 %s21, %s22
      %p67 = scmp.lt.s32.totalorder %s66, 1
      %s68 = scalar_select %p67, %s66, 1
      %s69 = sadd.s32 %s33, %s29
      %p70 = scmp.lt.s32.totalorder %s69, 1
      %s71 = scalar_select %p70, %s69, 1
      %s72 = ssub.s32 %s68, %s71
      %p73 = scmp.eq.s32.totalorder %s72, 0
      %s75 = sadd.s32 %s74, 1
      %s76 = scalar_select %p73, %s74, %s75
      %p79 = pneg %p73
      %p80 = scmp.eq.s32.totalorder %s14, 1
      %p81 = por %p79, %p80
      %p82 = scmp.ne.s32.totalorder %s74, %s77
      %p83 = scmp.eq.s32.totalorder %s14, 0
      %p84 = por %p82, %p83
      %p85 = scmp.ne.s32.totalorder %s74, %s77
      %p86 = scmp.eq.s32.totalorder %s19, 1
      %p87 = por %p85, %p86
      %p88 = scmp.ne.s32.totalorder %s77, %s78
      %p89 = scmp.eq.s32.totalorder %s19, 0
      %p90 = por %p88, %p89
      %p91 = scmp.ne.s32.totalorder %s77, %s78
      %p92 = scmp.eq.s32.totalorder %s20, 1
      %p93 = por %p91, %p92
      %p95 = scmp.ne.s32.totalorder %s78, %s94
      %p96 = scmp.eq.s32.totalorder %s20, 0
      %p97 = por %p95, %p96
      %s98 = ssub.s32 %s21, %s33
      %p99 = scmp.eq.s32.totalorder %s98, 0
      %s101 = sadd.s32 %s100, 1
      %s102 = scalar_select %p99, %s100, %s101
      %p105 = pneg %p99
      %p106 = scmp.eq.s32.totalorder %s14, 1
      %p107 = por %p105, %p106
      %p108 = scmp.ne.s32.totalorder %s100, %s103
      %p109 = scmp.eq.s32.totalorder %s14, 0
      %p110 = por %p108, %p109
      %p111 = scmp.ne.s32.totalorder %s100, %s103
      %p112 = scmp.eq.s32.totalorder %s19, 1
      %p113 = por %p111, %p112
      %p114 = scmp.ne.s32.totalorder %s103, %s104
      %p115 = scmp.eq.s32.totalorder %s19, 0
      %p116 = por %p114, %p115
      %p117 = scmp.ne.s32.totalorder %s103, %s104
      %p118 = scmp.eq.s32.totalorder %s20, 1
      %p119 = por %p117, %p118
      %p121 = scmp.ne.s32.totalorder %s104, %s120
      %p122 = scmp.eq.s32.totalorder %s20, 0
      %p123 = por %p121, %p122
      %p124 = scmp.le.s32.totalorder 1, %s14
      %p125 = scmp.lt.s32.totalorder %s14, 3
      %p126 = pnand %p124, %p125
      %p127 = pneg %p126
      // Predicated region
      $region9: #{tpu_custom_call.1} parent=5 // pred_check
        _
      $region10: #{tpu_custom_call.1} parent=5 // pred_check_branch
        %129 = sbr.rel (%p126) target = $region12
      $region11: #{tpu_custom_call.1} parent=5 // pred_region
        %s130 = ssub.s32 %s14, 1
      $region12: #{tpu_custom_call.1} parent=5 // pred_fallthru
        _
      %p131 = scmp.lt.s32.totalorder %s14, 2
      // Predicated region
      $region13: #{tpu_custom_call.1} parent=5 // pred_check
        %p132 = pneg %p131
      $region14: #{tpu_custom_call.1} parent=5 // pred_check_branch
        %134 = sbr.rel (%p132) target = $region16
      $region15: #{tpu_custom_call.1} parent=5 // pred_region
        // Predicated region
        $region17: #{tpu_custom_call.1} parent=15 // pred_check
          %p135 = pneg %p52
        $region18: #{tpu_custom_call.1} parent=15 // pred_check_branch
          %137 = sbr.rel (%p135) target = $region20
        $region19: #{tpu_custom_call.1} parent=15 // pred_region
          %s138 = sand.u32 %s42, 1
          %s139 = scalar_lea.sflag [#allocation4], %s138
          %s140 = sand.u32 %s42, 1
          %s141 = smul.addr %s140, 8
          %s142 = scalar_lea.vmem [#allocation3], %s141
          %s143 = sadd.s32 %s21, %s22
          %p144 = scmp.lt.s32.totalorder %s143, 1
          %s145 = scalar_select %p144, %s143, 1
          %s147 = ssub.s32 128, 128
          %148 = vsyncadd %s139, %s147
          %s149 = smul.addr %s145, 128
          %s150 = scalar_lea.hbm %s0, %s149
          %s152 = sshll.u32 %s142, 4
          %s153 = int_to_ptr.vmem [resolvable:$true] %s152
          %155 = dma.hbm_to_vmem [thread:$0]  %s150, 128, %s153, %s139
        $region20: #{tpu_custom_call.1} parent=15 // pred_fallthru
          _
        // Predicated region
        $region21: #{tpu_custom_call.1} parent=15 // pred_check
          %p156 = pneg %p84
        $region22: #{tpu_custom_call.1} parent=15 // pred_check_branch
          %158 = sbr.rel (%p156) target = $region24
        $region23: #{tpu_custom_call.1} parent=15 // pred_region
          %s159 = sand.u32 %s74, 1
          %s160 = scalar_lea.sflag [#allocation6], %s159
          %s161 = sand.u32 %s74, 1
          %s162 = smul.addr %s161, 8
          %s163 = scalar_lea.vmem [#allocation5], %s162
          %s164 = sadd.s32 %s21, %s22
          %p165 = scmp.lt.s32.totalorder %s164, 1
          %s166 = scalar_select %p165, %s164, 1
          %s168 = ssub.s32 128, 128
          %169 = vsyncadd %s160, %s168
          %s170 = smul.addr %s166, 128
          %s171 = scalar_lea.hbm %s1, %s170
          %s173 = sshll.u32 %s163, 4
          %s174 = int_to_ptr.vmem [resolvable:$true] %s173
          %176 = dma.hbm_to_vmem [thread:$0]  %s171, 128, %s174, %s160
        $region24: #{tpu_custom_call.1} parent=15 // pred_fallthru
          _
      $region16: #{tpu_custom_call.1} parent=5 // pred_fallthru
        _
      %p177 = scmp.le.s32.totalorder 1, %s14
      %p178 = scmp.lt.s32.totalorder %s14, 3
      %p179 = pnand %p177, %p178
      %p180 = pneg %p179
      // Predicated region
      $region25: #{tpu_custom_call.1} parent=5 // pred_check
        _
      $region26: #{tpu_custom_call.1} parent=5 // pred_check_branch
        %182 = sbr.rel (%p179) target = $region28
      $region27: #{tpu_custom_call.1} parent=5 // pred_region
        %s183 = ssub.s32 %s14, 1
        %s184 = sand.u32 %s45, 1
        %s185 = scalar_lea.sflag [#allocation4], %s184
        %s186 = sand.u32 %s45, 1
        %s187 = smul.addr %s186, 8
        %s188 = scalar_lea.vmem [#allocation3], %s187
        // Predicated region
        $region29: #{tpu_custom_call.1} parent=27 // pred_check
          %p189 = pneg %p58
        $region30: #{tpu_custom_call.1} parent=27 // pred_check_branch
          %191 = sbr.rel (%p189) target = $region32
        $region31: #{tpu_custom_call.1} parent=27 // pred_region
          %192 = dma.done %s185, 128
        $region32: #{tpu_custom_call.1} parent=27 // pred_fallthru
          _
        %s193 = sand.u32 %s77, 1
        %s194 = scalar_lea.sflag [#allocation6], %s193
        %s195 = sand.u32 %s77, 1
        %s196 = smul.addr %s195, 8
        %s197 = scalar_lea.vmem [#allocation5], %s196
        // Predicated region
        $region33: #{tpu_custom_call.1} parent=27 // pred_check
          %p198 = pneg %p90
        $region34: #{tpu_custom_call.1} parent=27 // pred_check_branch
          %200 = sbr.rel (%p198) target = $region36
        $region35: #{tpu_custom_call.1} parent=27 // pred_region
          %201 = dma.done %s194, 128
        $region36: #{tpu_custom_call.1} parent=27 // pred_fallthru
          _
        %s202 = sand.u32 %s45, 1
        %s203 = scalar_lea.sflag [#allocation4], %s202
        %s204 = sand.u32 %s45, 1
        %s205 = smul.addr %s204, 8
        %s206 = scalar_lea.vmem [#allocation3], %s205
        %p207 = pneg %p58
        %p208 = pneg %p55
        %s209 = sand.u32 %s77, 1
        %s210 = scalar_lea.sflag [#allocation6], %s209
        %s211 = sand.u32 %s77, 1
        %s212 = smul.addr %s211, 8
        %s213 = scalar_lea.vmem [#allocation5], %s212
        %p214 = pneg %p90
        %p215 = pneg %p87
        %p216 = pneg %p116
        %p217 = pneg %p113
        %p218 = scmp.lt.s32.totalorder %s23, 1
        %s219 = scalar_select %p218, %s23, 1
        %s220 = scalar_lea.vmem %s2, %s219
        %s221 = sadd.s32 %s23, %s24
        %p222 = scmp.lt.s32.totalorder %s221, 1
        %s223 = scalar_select %p222, %s221, 1
        %s224 = sadd.s32 %s23, %s24
        %p225 = scmp.lt.s32.totalorder %s224, 1
        %s226 = scalar_select %p225, %s224, 1
        %p227 = scmp.lt.s32.totalorder %s23, 1
        %s228 = scalar_select %p227, %s23, 1
        %s229 = scalar_lea.vmem %s2, %s228
        %p230 = scmp.eq.s32.totalorder %s24, 0
        // Predicated region
        $region37: #{tpu_custom_call.1} parent=27 // pred_check
          %p231 = pneg %p230
        $region38: #{tpu_custom_call.1} parent=27 // pred_check_branch
          %233 = sbr.rel (%p231) target = $region40
        $region39: #{tpu_custom_call.1} parent=27 // pred_region
          %vm234 = vcmask 7168
          %235 = vst.msk [vmem:[#allocation2] sm:$0xff] %vm234, 0.0
        $region40: #{tpu_custom_call.1} parent=27 // pred_fallthru
          _
        %v236 = vld [vmem:[%s188] sm:$0xff]
        %v237 = vld [vmem:[%s197] sm:$0xff]
        %vm238 = vcmask 261120
        %v239 = vsel %vm238, %v236, -inf
        %240 = vmax.xlane.f32.xlu0 %v239
        %v241 = vpop.xlane.xlu0 %240
        %v242 = vsub.f32 %v236, %v241
        %v243 = vmul.f32 %v242, 1.442695
        %v244 = vpow.pop %v243
        %v245 = vsel %vm238, %v244, 0.0
        %246 = vadd.xlane.f32.xlu0 %v245
        %v247 = vpop.xlane.xlu0 %246
        %v248 = vlog2.pop %v247
        %v249 = vmul.f32 %v248, 0.6931472
        %v250 = vsub.f32 %v242, %v249
        %v251 = vsub.f32 0.0, %v237
        %v252 = vmul.f32 %v251, %v250
        %v253 = vsel %vm238, %v252, 0.0
        %254 = vadd.xlane.f32.xlu0 %v253
        %v255 = vpop.xlane.xlu0 %254
        %s256 = sadd.s32 %s23, %s24
        %s257 = smul.u32 %s256, 8
        %v258 = vlaneseq
        %v259 = vshrl.u32 %v258, 7
        %v260 = vstv %s257
        %v261 = vadd.s32 %v260, %v259
        %vm262 = vcmp.lt.s32.totalorder %v261, 16
        %v263 = vsel %vm262, %v255, 0.0
        %v264 = vld [vmem:[#allocation2] sm:$0xff]
        %v265 = vadd.f32 %v264, %v263
        %vm266 = vcmask 7168
        %267 = vst.msk [vmem:[#allocation2] sm:$0xff] %vm266, %v265
        // Predicated region
        $region41: #{tpu_custom_call.1} parent=27 // pred_check
          %p268 = pneg %p230
        $region42: #{tpu_custom_call.1} parent=27 // pred_check_branch
          %270 = sbr.rel (%p268) target = $region44
        $region43: #{tpu_custom_call.1} parent=27 // pred_region
          %v271 = vld [vmem:[#allocation2] sm:$0xff]
          %v272 = vsel %vm266, %v271, 0.0
          %273 = vadd.xlane.f32.xlu0 %v272
          %v274 = vpop.xlane.xlu0 %273
          %v275 = vrot.slane %v274, 4
          %v276 = vadd.f32 %v274, %v275
          %v277 = vrot.slane %v276, 2
          %v278 = vadd.f32 %v276, %v277
          %v279 = vrot.slane %v278, 1
          %v280 = vadd.f32 %v278, %v279
          %s281 = vtos %v280
          %v282 = vstv %s281
          %vm283 = vcmask 0
          %284 = vst.msk [vmem:[%s229] sm:$0x1] %vm283, %v282
        $region44: #{tpu_custom_call.1} parent=27 // pred_fallthru
          _
        %p285 = scmp.lt.s32.totalorder %s23, 1
        %s286 = scalar_select %p285, %s23, 1
        %s287 = scalar_lea.vmem %s2, %s286
        // Predicated region
        $region45: #{tpu_custom_call.1} parent=27 // pred_check
          %p288 = pneg %p113
        $region46: #{tpu_custom_call.1} parent=27 // pred_check_branch
          %290 = sbr.rel (%p288) target = $region48
        $region47: #{tpu_custom_call.1} parent=27 // pred_region
          _
        $region48: #{tpu_custom_call.1} parent=27 // pred_fallthru
          _
      $region28: #{tpu_custom_call.1} parent=5 // pred_fallthru
        _
      %p291 = scmp.le.s32.totalorder 2, %s14
      // Predicated region
      $region49: #{tpu_custom_call.1} parent=5 // pred_check
        %p292 = pneg %p291
      $region50: #{tpu_custom_call.1} parent=5 // pred_check_branch
        %294 = sbr.rel (%p292) target = $region52
      $region51: #{tpu_custom_call.1} parent=5 // pred_region
        %s295 = ssub.s32 %s14, 2
        // Predicated region
        $region53: #{tpu_custom_call.1} parent=51 // pred_check
          %p296 = pneg %p119
        $region54: #{tpu_custom_call.1} parent=51 // pred_check_branch
          %298 = sbr.rel (%p296) target = $region56
        $region55: #{tpu_custom_call.1} parent=51 // pred_region
          %p299 = scmp.lt.s32.totalorder %s25, 1
          %s300 = scalar_select %p299, %s25, 1
          %s301 = scalar_lea.vmem %s2, %s300
        $region56: #{tpu_custom_call.1} parent=51 // pred_fallthru
          _
      $region52: #{tpu_custom_call.1} parent=5 // pred_fallthru
        _
    $region6: #{tpu_custom_call.1} parent=1 // loop_footer
      %s18 = sadd.s32 1, %s14
    $region7: #{tpu_custom_call.1} parent=1 // loop_footer_branch
      %13 = sbr.rel target = $region3
    $region8: #{tpu_custom_call.1} parent=1 // loop_exit
      _
    %302 = vsyncpa [#allocation4], 1
    %s303 = scalar_lea.sflag [#allocation4], 1
    %304 = vsyncpa %s303, 1
    %305 = vsyncpa [#allocation6], 1
    %s306 = scalar_lea.sflag [#allocation6], 1
    %307 = vsyncpa %s306, 1

</llo_original>
